<compile_context>
chip_gen: v5e
topology: v5e:2x2
jax: 0.10.0
libtpu: 0.0.40
codegen_flags: <defaults>
</compile_context>

<pallas_src>
import functools

import jax
import jax.numpy as jnp
from jax.experimental import pallas as pl
from jax.experimental.pallas import tpu as pltpu


def _shift_kernel(x_ref, o_ref, *, dh, dwc):
    """Block view: (1, TILE_H, W*C).

    dh  : sublane (H) roll inside the block; 0 when the H roll is handled by
          the input BlockSpec index_map (pure DMA address relabeling).
    dwc : lane roll on the flattened W*C axis (= dw * C).
    """
    x = x_ref[...]
    if dwc:
        x = jnp.roll(x, dwc, axis=-1)   # lane rotation, static shift
    if dh:
        x = jnp.roll(x, dh, axis=-2)    # sublane rotation, static shift
    o_ref[...] = x                      # single full (unmasked) store


def _pick_tile_h(H, dh, row_bytes):
    """Largest H tile T with H % T == 0, dh % T == 0 and (T % 8 == 0 or T == H).

    Prefers tiles whose blocks stay small enough that in+out double-buffering
    fits comfortably in VMEM on every TPU generation (incl. v7x's 64 MiB).
    Returns None if no legal tile exists (H roll then done in-kernel on a
    full-H block).
    """
    cands = [T for T in range(1, H + 1)
             if H % T == 0 and dh % T == 0 and (T % 8 == 0 or T == H)]
    if not cands:
        return None
    budget = 2 * 1024 * 1024  # per-block bytes; x4 for in/out double buffering
    fitting = [T for T in cands if T * row_bytes <= budget]
    return max(fitting) if fitting else min(cands)


def cyclic_shift(x, displacement):
    """Pallas equivalent of CyclicShift(displacement)(x) for x of shape (B,H,W,C):
    torch.roll(x, shifts=(displacement, displacement), dims=(1, 2))."""
    B, H, W, C = x.shape
    WC = W * C
    itemsize = jnp.dtype(x.dtype).itemsize

    dh = displacement % H          # Python % -> always in [0, H)
    dw = displacement % W
    dwc = dw * C                   # W-roll as a lane roll on flattened W*C

    # Free, contiguous reshape to a lane-dense layout.
    x2 = x.reshape(B, H, WC)

    cost = pl.CostEstimate(flops=0, transcendentals=0,
                           bytes_accessed=2 * x.size * itemsize)

    tile_h = _pick_tile_h(H, dh, WC * itemsize)

    if tile_h is not None:
        # H-roll done by DMA address relabeling in the input index_map.
        n_h = H // tile_h
        h_shift = dh // tile_h
        kernel = functools.partial(_shift_kernel, dh=0, dwc=dwc)
        block_bytes = tile_h * WC * itemsize
        grid = (B, n_h)
        in_specs = [pl.BlockSpec(
            (1, tile_h, WC),
            lambda b, h, _n=n_h, _s=h_shift: (b, (h + _n - _s) % _n, 0))]
        out_specs = pl.BlockSpec((1, tile_h, WC), lambda b, h: (b, h, 0))
        dim_sem = ("parallel", "parallel")
    else:
        # Shift does not align with any legal H tile: full-H block per batch
        # element, H-roll in-kernel.
        kernel = functools.partial(_shift_kernel, dh=dh, dwc=dwc)
        block_bytes = H * WC * itemsize
        grid = (B,)
        in_specs = [pl.BlockSpec((1, H, WC), lambda b: (b, 0, 0))]
        out_specs = pl.BlockSpec((1, H, WC), lambda b: (b, 0, 0))
        dim_sem = ("parallel",)

    # in + out blocks, double-buffered, plus slack.  Clamp to v7x's 64 MiB VMEM.
    vmem_limit = int(min(max(4 * block_bytes + (1 << 20), 32 << 20), 64 << 20))

    out2 = pl.pallas_call(
        kernel,
        out_shape=jax.ShapeDtypeStruct((B, H, WC), x.dtype),
        grid_spec=pltpu.PrefetchScalarGridSpec(
            num_scalar_prefetch=0,
            grid=grid,
            in_specs=in_specs,
            out_specs=out_specs,
        ),
        compiler_params=pltpu.CompilerParams(
            dimension_semantics=dim_sem,
            vmem_limit_bytes=vmem_limit,
        ),
        cost_estimate=cost,
    )(x2)

    return out2.reshape(B, H, W, C)


if __name__ == "__main__":
    key = jax.random.PRNGKey(0)

    # Small shapes consistent with the module: (B, H, W, C) with roll on (H, W).
    B, H, W, C = 2, 16, 16, 4
    displacement = 3

    x = jax.random.normal(key, (B, H, W, C), dtype=jnp.float32)

    out = jax.block_until_ready(cyclic_shift(x, displacement))
    ref = jnp.roll(x, shift=(displacement, displacement), axis=(1, 2))
    assert out.shape == ref.shape and out.dtype == ref.dtype
    assert jnp.array_equal(out, ref), "mismatch (in-kernel roll path)"

    # Exercise the DMA-relabeled H-roll path (shift aligned to an 8-row tile).
    x2 = jax.random.normal(jax.random.PRNGKey(0), (2, 32, 16, 8), dtype=jnp.float32)
    out2 = jax.block_until_ready(cyclic_shift(x2, 8))
    ref2 = jnp.roll(x2, shift=(8, 8), axis=(1, 2))
    assert jnp.array_equal(out2, ref2), "mismatch (DMA relabel path)"

    # Negative displacement (torch.roll supports it; Python % normalizes it).
    out3 = jax.block_until_ready(cyclic_shift(x, -4))
    ref3 = jnp.roll(x, shift=(-4, -4), axis=(1, 2))
    assert jnp.array_equal(out3, ref3), "mismatch (negative displacement)"

    print("KERNEL_OK")
</pallas_src>

<mosaic_0001>
module attributes {stable_mosaic.version = 11 : i64} {
  func.func @_shift_kernel(%arg0: i32, %arg1: memref<1x16x64xf32, #tpu.memory_space<vmem>>, %arg2: memref<1x16x64xf32, #tpu.memory_space<vmem>>) attributes {dimension_semantics = [#tpu.dimension_semantics<parallel>], iteration_bounds = array<i64: 2>, scalar_prefetch = 0 : i64, scratch_operands = 0 : i64, tpu.core_type = #tpu.core_type<tc>, window_params = [{transform_indices = @transform_0, window_bounds = array<i64: 1, 16, 64>}, {transform_indices = @transform_1, window_bounds = array<i64: 1, 16, 64>}]} {
    %c0 = arith.constant 0 : index
    %c0_0 = arith.constant 0 : index
    %c0_1 = arith.constant 0 : index
    %0 = vector.load %arg1[%c0, %c0_0, %c0_1] : memref<1x16x64xf32, #tpu.memory_space<vmem>>, vector<1x16x64xf32>
    %1 = vector.extract_strided_slice %0 {offsets = [0, 0, 52], sizes = [1, 16, 12], strides = [1, 1, 1]} : vector<1x16x64xf32> to vector<1x16x12xf32>
    %2 = vector.extract_strided_slice %0 {offsets = [0, 0, 0], sizes = [1, 16, 52], strides = [1, 1, 1]} : vector<1x16x64xf32> to vector<1x16x52xf32>
    %3 = tpu.concatenate %1, %2 in 2 : vector<1x16x12xf32>, vector<1x16x52xf32> -> vector<1x16x64xf32>
    %4 = vector.extract_strided_slice %3 {offsets = [0, 13, 0], sizes = [1, 3, 64], strides = [1, 1, 1]} : vector<1x16x64xf32> to vector<1x3x64xf32>
    %5 = vector.extract_strided_slice %3 {offsets = [0, 0, 0], sizes = [1, 13, 64], strides = [1, 1, 1]} : vector<1x16x64xf32> to vector<1x13x64xf32>
    %6 = tpu.concatenate %4, %5 in 1 : vector<1x3x64xf32>, vector<1x13x64xf32> -> vector<1x16x64xf32>
    %c0_2 = arith.constant 0 : index
    %c0_3 = arith.constant 0 : index
    %c0_4 = arith.constant 0 : index
    %7 = vector.load %arg2[%c0_2, %c0_3, %c0_4] : memref<1x16x64xf32, #tpu.memory_space<vmem>>, vector<1x16x64xf32>
    tpu.vector_store %arg2[%c0_2, %c0_3, %c0_4], %6 {strides = array<i32>} : memref<1x16x64xf32, #tpu.memory_space<vmem>>, vector<1x16x64xf32>,
    return
  }
  func.func @transform_0(%arg0: i32) -> (i32, i32, i32) {
    %c0_i32 = arith.constant 0 : i32
    %c0_i32_0 = arith.constant 0 : i32
    %c0_i32_1 = arith.constant 0 : i32
    return %arg0, %c0_i32, %c0_i32_0 : i32, i32, i32
  }
  func.func @transform_1(%arg0: i32) -> (i32, i32, i32) {
    %c0_i32 = arith.constant 0 : i32
    %c0_i32_0 = arith.constant 0 : i32
    %c0_i32_1 = arith.constant 0 : i32
    return %arg0, %c0_i32, %c0_i32_0 : i32, i32, i32
  }
}

</mosaic_0001>

<llo_original>
// kernel: tpu_custom_call.1
$region0: #{tpu_custom_call.1}
  #allocation0 [shape = 'u32[]', space=smem, size = 0x4, offset = 0x4, fixed_abs, tag = 'smem constant byte address 0x4 - core index']
  #allocation1 [shape = 'u32[72,128]{1,0:T(1,128)}', space=vmem, size = 0x9000, scoped, tag = 'internal scratch']
  %s0 = inlined_call_operand.hbm [shape: f32[2,16,64], index: 0, kind: input, shape index: {}]
  %s1 = inlined_call_operand.hbm [shape: f32[2,16,64], index: 1, kind: output, shape index: {}]
  %s2 = sld [smem:[#allocation0]]
  $region41: #{tpu_custom_call.1} parent=0
    _
  %s4 = ssub.s32 1, %s2
  %s5 = scalar_select 0, %s4, %s2
  $region1: #{tpu_custom_call.1} parent=0
    #allocation2 [shape = 'u8[16384]{0}', space=vmem, size = 0x4000, scoped, tag = 'input window, operand 0']
    #allocation3 [shape = 's32[2]{0}', space=sflag, size = 0x8, scoped, tag = 'scoped memory for tpu_custom_call.1']
    #allocation4 [shape = 's32[2]{0}', space=sflag, size = 0x8, scoped, tag = 'scoped memory for tpu_custom_call.1']
    #allocation5 [shape = 'u8[16384]{0}', space=vmem, size = 0x4000, scoped, tag = 'output window, operand 0']
    %6 = vsyncpa [#allocation3], 0
    %s7 = scalar_lea.sflag [#allocation3], 1
    %8 = vsyncpa %s7, 0
    %9 = vsyncpa [#allocation4], 0
    %s10 = scalar_lea.sflag [#allocation4], 1
    %11 = vsyncpa %s10, 0
    loop: start=0, step=1, limit=4
    $region2: #{tpu_custom_call.1} parent=1 // loop_pre_header
      _
    $region3: #{tpu_custom_call.1} parent=1 // loop_header
      %s13 = sphi 0, %s17
      %p14 = scmp.ge.s32.totalorder %s13, 4
      %s23 = sphi 0, %s25
      %s26 = sphi 0, %s23
      %s27 = sphi 0, %s26
      %s43 = sphi 0, %s27
      %s49 = sphi 0, %s51
      %s52 = sphi 0, %s49
      %s53 = sphi 0, %s52
      %s69 = sphi 0, %s53
    $region4: #{tpu_custom_call.1} parent=1 // loop_header_branch
      %16 = sbr.rel (%p14) target = $region8
    $region5: #{tpu_custom_call.1} parent=1 // loop_body
      %s18 = ssub.s32 %s13, 1
      %s19 = ssub.s32 %s13, 2
      %s20 = sadd.s32 %s13, 1
      %s21 = ssub.s32 %s13, %s20
      %p22 = scmp.eq.s32.totalorder %s21, 0
      %s24 = sadd.s32 %s23, 1
      %s25 = scalar_select %p22, %s23, %s24
      %p28 = pneg %p22
      %p29 = scmp.eq.s32.totalorder %s13, 1
      %p30 = por %p28, %p29
      %p31 = scmp.ne.s32.totalorder %s23, %s26
      %p32 = scmp.eq.s32.totalorder %s13, 0
      %p33 = por %p31, %p32
      %p34 = scmp.ne.s32.totalorder %s23, %s26
      %p35 = scmp.eq.s32.totalorder %s18, 1
      %p36 = por %p34, %p35
      %p37 = scmp.ne.s32.totalorder %s26, %s27
      %p38 = scmp.eq.s32.totalorder %s18, 0
      %p39 = por %p37, %p38
      %p40 = scmp.ne.s32.totalorder %s26, %s27
      %p41 = scmp.eq.s32.totalorder %s19, 1
      %p42 = por %p40, %p41
      %p44 = scmp.ne.s32.totalorder %s27, %s43
      %p45 = scmp.eq.s32.totalorder %s19, 0
      %p46 = por %p44, %p45
      %s47 = ssub.s32 %s13, %s20
      %p48 = scmp.eq.s32.totalorder %s47, 0
      %s50 = sadd.s32 %s49, 1
      %s51 = scalar_select %p48, %s49, %s50
      %p54 = pneg %p48
      %p55 = scmp.eq.s32.totalorder %s13, 1
      %p56 = por %p54, %p55
      %p57 = scmp.ne.s32.totalorder %s49, %s52
      %p58 = scmp.eq.s32.totalorder %s13, 0
      %p59 = por %p57, %p58
      %p60 = scmp.ne.s32.totalorder %s49, %s52
      %p61 = scmp.eq.s32.totalorder %s18, 1
      %p62 = por %p60, %p61
      %p63 = scmp.ne.s32.totalorder %s52, %s53
      %p64 = scmp.eq.s32.totalorder %s18, 0
      %p65 = por %p63, %p64
      %p66 = scmp.ne.s32.totalorder %s52, %s53
      %p67 = scmp.eq.s32.totalorder %s19, 1
      %p68 = por %p66, %p67
      %p70 = scmp.ne.s32.totalorder %s53, %s69
      %p71 = scmp.eq.s32.totalorder %s19, 0
      %p72 = por %p70, %p71
      %p73 = scmp.le.s32.totalorder 1, %s13
      %p74 = scmp.lt.s32.totalorder %s13, 3
      %p75 = pnand %p73, %p74
      %p76 = pneg %p75
      // Predicated region
      $region9: #{tpu_custom_call.1} parent=5 // pred_check
        _
      $region10: #{tpu_custom_call.1} parent=5 // pred_check_branch
        %78 = sbr.rel (%p75) target = $region12
      $region11: #{tpu_custom_call.1} parent=5 // pred_region
        %s79 = ssub.s32 %s13, 1
      $region12: #{tpu_custom_call.1} parent=5 // pred_fallthru
        _
      %p80 = scmp.lt.s32.totalorder %s13, 2
      // Predicated region
      $region13: #{tpu_custom_call.1} parent=5 // pred_check
        %p81 = pneg %p80
      $region14: #{tpu_custom_call.1} parent=5 // pred_check_branch
        %83 = sbr.rel (%p81) target = $region16
      $region15: #{tpu_custom_call.1} parent=5 // pred_region
        // Predicated region
        $region17: #{tpu_custom_call.1} parent=15 // pred_check
          %p84 = pneg %p33
        $region18: #{tpu_custom_call.1} parent=15 // pred_check_branch
          %86 = sbr.rel (%p84) target = $region20
        $region19: #{tpu_custom_call.1} parent=15 // pred_region
          %s87 = sand.u32 %s23, 1
          %s88 = scalar_lea.sflag [#allocation3], %s87
          %s89 = sand.u32 %s23, 1
          %s90 = smul.addr %s89, 16
          %s91 = scalar_lea.vmem [#allocation2], %s90
          %93 = vsyncadd %s88, 0
          %s94 = smul.addr %s13, 2
          %s95 = smul.addr %s94, 8
          %s96 = scalar_lea.hbm %s0, %s95
          %s97 = sshll.u32 %s96, 4
          %s98 = int_to_ptr.hbm [resolvable:$true] %s97
          %s99 = sshll.u32 %s91, 4
          %s100 = int_to_ptr.vmem [resolvable:$true] %s99
          %105 = dma.hbm_to_vmem [thread:$0]  %s98, 256, %s100, %s88, 128, 128, 8
        $region20: #{tpu_custom_call.1} parent=15 // pred_fallthru
          _
      $region16: #{tpu_custom_call.1} parent=5 // pred_fallthru
        _
      %p106 = scmp.le.s32.totalorder 1, %s13
      %p107 = scmp.lt.s32.totalorder %s13, 3
      %p108 = pnand %p106, %p107
      %p109 = pneg %p108
      // Predicated region
      $region21: #{tpu_custom_call.1} parent=5 // pred_check
        _
      $region22: #{tpu_custom_call.1} parent=5 // pred_check_branch
        %111 = sbr.rel (%p108) target = $region24
      $region23: #{tpu_custom_call.1} parent=5 // pred_region
        %s112 = ssub.s32 %s13, 1
        %s113 = sand.u32 %s26, 1
        %s114 = scalar_lea.sflag [#allocation3], %s113
        %s115 = sand.u32 %s26, 1
        %s116 = smul.addr %s115, 16
        %s117 = scalar_lea.vmem [#allocation2], %s116
        // Predicated region
        $region25: #{tpu_custom_call.1} parent=23 // pred_check
          %p118 = pneg %p39
        $region26: #{tpu_custom_call.1} parent=23 // pred_check_branch
          %120 = sbr.rel (%p118) target = $region28
        $region27: #{tpu_custom_call.1} parent=23 // pred_region
          %122 = dma.done %s114, 256
        $region28: #{tpu_custom_call.1} parent=23 // pred_fallthru
          _
        %s123 = sand.u32 %s26, 1
        %s124 = scalar_lea.sflag [#allocation3], %s123
        %s125 = sand.u32 %s26, 1
        %s126 = smul.addr %s125, 16
        %s127 = scalar_lea.vmem [#allocation2], %s126
        %p128 = pneg %p39
        %p129 = pneg %p36
        %p130 = pneg %p65
        %p131 = pneg %p62
        %s132 = sand.u32 %s52, 1
        %s133 = scalar_lea.sflag [#allocation4], %s132
        %s134 = sand.u32 %s52, 1
        %s135 = smul.addr %s134, 16
        %s136 = scalar_lea.vmem [#allocation5], %s135
        %v137 = vld [vmem:[%s117] sm:$0xff]
        %v138 = vld [vmem:[%s117 + $0x8] sm:$0xff]
        %141 = vrot.lane.b32.xlu0 %v137, 76
        %v142 = vpop.permute.xlu0 %141
        %143 = vrot.lane.b32.xlu0 %v138, 76
        %v144 = vpop.permute.xlu0 %143
        %147 = vrot.lane.b32.xlu0 %v137, 12
        %v148 = vpop.permute.xlu0 %147
        %149 = vrot.lane.b32.xlu0 %v138, 12
        %v150 = vpop.permute.xlu0 %149
        %vm153 = vcmask 97280
        %v154 = vsel %vm153, %v142, %v148
        %v155 = vsel %vm153, %v144, %v150
        %v157 = vrot.slane %v155, 5
        %vm160 = vcmask 1042432
        %v161 = vrot.slane %v154, 5
        %v162 = vsel %vm160, %v161, %v157
        %v165 = vsel %vm160, %v157, %v161
        %vm166 = vcmask 523264
        %167 = vst.msk [vmem:[%s136] sm:$0xff] %vm166, %v165
        %168 = vst.msk [vmem:[%s136 + $0x8] sm:$0xff] %vm166, %v162
        %s169 = sand.u32 %s52, 1
        %s170 = scalar_lea.sflag [#allocation4], %s169
        %s171 = sand.u32 %s52, 1
        %s172 = smul.addr %s171, 16
        %s173 = scalar_lea.vmem [#allocation5], %s172
        // Predicated region
        $region29: #{tpu_custom_call.1} parent=23 // pred_check
          %p174 = pneg %p62
        $region30: #{tpu_custom_call.1} parent=23 // pred_check_branch
          %176 = sbr.rel (%p174) target = $region32
        $region31: #{tpu_custom_call.1} parent=23 // pred_region
          %178 = vsyncadd %s170, 0
          %s179 = smul.addr %s18, 2
          %s180 = smul.addr %s179, 8
          %s181 = scalar_lea.hbm %s1, %s180
          %s182 = sshll.u32 %s173, 4
          %s183 = int_to_ptr.vmem [resolvable:$true] %s182
          %s184 = sshll.u32 %s181, 4
          %s185 = int_to_ptr.hbm [resolvable:$true] %s184
          %190 = dma.vmem_to_hbm [thread:$0]  %s183, 256, %s185, %s170, 128, 128, 8
        $region32: #{tpu_custom_call.1} parent=23 // pred_fallthru
          _
      $region24: #{tpu_custom_call.1} parent=5 // pred_fallthru
        _
      %p191 = scmp.le.s32.totalorder 2, %s13
      // Predicated region
      $region33: #{tpu_custom_call.1} parent=5 // pred_check
        %p192 = pneg %p191
      $region34: #{tpu_custom_call.1} parent=5 // pred_check_branch
        %194 = sbr.rel (%p192) target = $region36
      $region35: #{tpu_custom_call.1} parent=5 // pred_region
        %s195 = ssub.s32 %s13, 2
        // Predicated region
        $region37: #{tpu_custom_call.1} parent=35 // pred_check
          %p196 = pneg %p68
        $region38: #{tpu_custom_call.1} parent=35 // pred_check_branch
          %198 = sbr.rel (%p196) target = $region40
        $region39: #{tpu_custom_call.1} parent=35 // pred_region
          %s199 = sand.u32 %s53, 1
          %s200 = scalar_lea.sflag [#allocation4], %s199
          %s201 = sand.u32 %s53, 1
          %s202 = smul.addr %s201, 16
          %s203 = scalar_lea.vmem [#allocation5], %s202
          %205 = dma.done %s200, 256
        $region40: #{tpu_custom_call.1} parent=35 // pred_fallthru
          _
      $region36: #{tpu_custom_call.1} parent=5 // pred_fallthru
        _
    $region6: #{tpu_custom_call.1} parent=1 // loop_footer
      %s17 = sadd.s32 1, %s13
    $region7: #{tpu_custom_call.1} parent=1 // loop_footer_branch
      %12 = sbr.rel target = $region3
    $region8: #{tpu_custom_call.1} parent=1 // loop_exit
      _
    %206 = vsyncpa [#allocation3], 1
    %s207 = scalar_lea.sflag [#allocation3], 1
    %208 = vsyncpa %s207, 1
    %209 = vsyncpa [#allocation4], 1
    %s210 = scalar_lea.sflag [#allocation4], 1
    %211 = vsyncpa %s210, 1

</llo_original>
